<compile_context>
chip_gen: v7x
topology: tpu7x:2x2x1
jax: 0.10.0
libtpu: 0.0.40
codegen_flags: <defaults>
</compile_context>

<pallas_src>
import jax
import jax.numpy as jnp
import numpy as np
from jax.experimental import pallas as pl
from jax.experimental.pallas import tpu as pltpu

NUM_JOINTS = 24
# Standard SMPL kinematic tree (parent of joint i, root = -1).
KINTREE_PARENTS = [-1, 0, 0, 0, 1, 2, 3, 4, 5, 6, 7, 8,
                   9, 9, 9, 12, 13, 14, 16, 17, 18, 19, 20, 21]


def _round_up(x, m):
    return (x + m - 1) // m * m


# ----------------------------------------------------------------------------
# Glue: axis-angle -> rotmat, SMPL forward kinematics (tiny, sequential chain)
# ----------------------------------------------------------------------------
def rodrigues(axisang):
    """axis-angle (..., 3) -> rotation matrices (..., 3, 3)."""
    angle = jnp.linalg.norm(axisang + 1e-8, axis=-1, keepdims=True)     # (...,1)
    axis = axisang / angle
    s = jnp.sin(angle)[..., None]                                       # (...,1,1)
    c = jnp.cos(angle)[..., None]
    x, y, z = axis[..., 0], axis[..., 1], axis[..., 2]
    zero = jnp.zeros_like(x)
    K = jnp.stack([zero, -z, y, z, zero, -x, -y, x, zero], axis=-1)
    K = K.reshape(axisang.shape[:-1] + (3, 3))
    eye = jnp.eye(3, dtype=axisang.dtype)
    return eye + s * K + (1.0 - c) * (K @ K)


def compute_smpl_skeleton(pose, v_template, j_regressor):
    """Mirrors InvSkinModel.compute_smpl_skeleton, returns (B, 24, 4, 4)."""
    B = pose.shape[0]
    rotmats = rodrigues(pose.reshape(B, NUM_JOINTS, 3))                  # (B,24,3,3)
    th_v = jnp.tile(v_template, (B, 1, 1))                               # (B,V,3)
    th_j = jnp.einsum('jv,bvc->bjc', j_regressor, th_v)                  # (B,24,3)

    bottom = jnp.tile(jnp.array([[[0., 0., 0., 1.]]], pose.dtype), (B, 1, 1))

    def with_zeros(mat34):                                               # (B,3,4)->(B,4,4)
        return jnp.concatenate([mat34, bottom], axis=1)

    results = [with_zeros(jnp.concatenate(
        [rotmats[:, 0], th_j[:, 0, :, None]], axis=2))]
    for i in range(1, NUM_JOINTS):
        parent = KINTREE_PARENTS[i]
        rel = with_zeros(jnp.concatenate(
            [rotmats[:, i], (th_j[:, i] - th_j[:, parent])[:, :, None]], axis=2))
        results.append(results[parent] @ rel)
    A = jnp.stack(results, axis=1)                                       # (B,24,4,4)
    j_h = jnp.concatenate(
        [th_j, jnp.zeros((B, NUM_JOINTS, 1), pose.dtype)], axis=-1)      # (B,24,4)
    tmp = jnp.einsum('bkij,bkj->bki', A, j_h)                            # (B,24,4)
    pack = jnp.zeros_like(A).at[..., 3].set(tmp)                         # last column only
    return A - pack                                                      # (B,24,4,4)


# ----------------------------------------------------------------------------
# Pallas kernel: per-point transform blending + application
# ----------------------------------------------------------------------------
def _blend(tinv_ref, w_ref, pts_ref):
    # tinv_ref : (1, 12, 24)  j-major rows: row 3*j+i = Ainv[k, i, j]  (i < 3)
    # w_ref    : (1, 24, TN)  skinning weights tile (bf16 or f32)
    # pts_ref  : (1, 3,  TN)  xyz points tile (f32); homogeneous "1" is implicit
    tinv = tinv_ref[0]                                                   # (12, 24) f32
    # bf16 -> f32 upcast happens in VMEM (cheap VPU conversion); the HBM/DMA
    # side already got the bandwidth win, and v5e's VPU (no bf16 ALUs) stays
    # in f32 for all elementwise math.
    w = w_ref[0].astype(jnp.float32)                                     # (24, TN)
    pts = pts_ref[0]                                                     # (3, TN)

    # MXU matmul on only the 12 live rows of the per-point 4x4 transforms.
    p_T = jnp.dot(tinv, w, preferred_element_type=jnp.float32)           # (12, TN)

    # Grouped contraction: rows [0:3] x-coeff, [3:6] y-coeff, [6:9] z-coeff,
    # [9:12] constant column.  Three sublane-broadcast muls + adds on (3, TN)
    # values; no per-scalar-row slicing, no materialized ones row.
    return (p_T[0:3] * pts[0:1]
            + p_T[3:6] * pts[1:2]
            + p_T[6:9] * pts[2:3]
            + p_T[9:12])


def _inv_skin_kernel_folded(tinv_ref, w_ref, pts_ref, out_ref):
    # trans already folded into the constant rows of tinv on the host.
    out_ref[0] = _blend(tinv_ref, w_ref, pts_ref).astype(out_ref.dtype)


def _inv_skin_kernel_trans(tinv_ref, w_ref, pts_ref, trans_ref, out_ref):
    # Exact path: explicit subtract of trans (B,3,1), lane-broadcast.
    out = _blend(tinv_ref, w_ref, pts_ref) - trans_ref[0]
    out_ref[0] = out.astype(out_ref.dtype)


def inv_skin_forward(points, pose, skinning_weights, v_template, j_regressor,
                     trans=None, *, tile_n=4096, weights_dtype=jnp.bfloat16,
                     fold_trans=True):
    """points (B,3,N), pose (B,72), skinning_weights (B,24,N), trans (B,3).

    fold_trans=True subtracts trans on the host inside the transforms; this is
    exact iff skinning weights sum to 1 per point (true for SMPL LBS weights).
    Set fold_trans=False (and weights_dtype=float32) for the bit-faithful path.
    """
    B, _, N = points.shape
    f32 = jnp.float32
    if trans is None:
        trans = jnp.zeros((B, 3), f32)
    trans = trans.astype(f32)

    # ---- tiny glue in plain JAX: FK chain + batched 4x4 inverses ----
    A = compute_smpl_skeleton(pose.astype(f32), v_template.astype(f32),
                              j_regressor.astype(f32))                   # (B,24,4,4)
    Ainv = jnp.linalg.inv(A)                                             # (B,24,4,4)
    # j-major 12-row flattening: row 3*j + i  holds  Ainv[b, k, i, j]  (i < 3).
    tinv = jnp.transpose(Ainv[:, :, :3, :], (0, 3, 2, 1)).reshape(
        B, 12, NUM_JOINTS).astype(f32)                                   # (B,12,24)
    if fold_trans:
        # Exact because sum_k w[k, n] == 1 for SMPL skinning weights.
        tinv = tinv.at[:, 9:12, :].add(-trans[:, :, None])

    # ---- tile-size selection (lane-dense, VMEM is never the constraint) ----
    lanes = _round_up(N, 128)
    tile = max(128, _round_up(min(tile_n, lanes), 128))
    if B * ((lanes + tile - 1) // tile) < 2 and lanes >= 256:
        # v7x has 2 TensorCores; keep >= 2 grid steps so megacore sharding
        # of the ("parallel","parallel") grid has work for both cores.
        tile = _round_up((lanes + 1) // 2, 128)
    Np = _round_up(N, tile)
    grid_n = Np // tile

    pts = points.astype(f32)
    w = skinning_weights
    if Np != N:
        pad = ((0, 0), (0, 0), (0, Np - N))
        pts = jnp.pad(pts, pad)
        w = jnp.pad(w, pad)
    # bf16 weights halve ~77% of the HBM input bytes on this bandwidth-bound
    # kernel; upcast back to f32 inside the kernel.
    w = w.astype(weights_dtype)

    in_specs = [
        pl.BlockSpec((1, 12, NUM_JOINTS), lambda b, n: (b, 0, 0)),
        pl.BlockSpec((1, NUM_JOINTS, tile), lambda b, n: (b, 0, n)),
        pl.BlockSpec((1, 3, tile), lambda b, n: (b, 0, n)),
    ]
    args = [tinv, w, pts]
    kernel = _inv_skin_kernel_folded
    if not fold_trans:
        in_specs.append(pl.BlockSpec((1, 3, 1), lambda b, n: (b, 0, 0)))
        args.append(trans[:, :, None])
        kernel = _inv_skin_kernel_trans

    out = pl.pallas_call(
        kernel,
        out_shape=jax.ShapeDtypeStruct((B, 3, Np), points.dtype),
        grid_spec=pltpu.PrefetchScalarGridSpec(
            num_scalar_prefetch=0,
            grid=(B, grid_n),
            in_specs=in_specs,
            out_specs=pl.BlockSpec((1, 3, tile), lambda b, n: (b, 0, n)),
        ),
        compiler_params=pltpu.CompilerParams(
            dimension_semantics=("parallel", "parallel")),
    )(*args)

    if Np != N:
        out = out[:, :, :N]
    return {'cano_cloth_points': out}


# ----------------------------------------------------------------------------
# Pure-JAX reference (mirrors the PyTorch forward exactly)
# ----------------------------------------------------------------------------
def _reference_forward(points, pose, skinning_weights, v_template, j_regressor, trans):
    B, _, N = points.shape
    A = compute_smpl_skeleton(pose, v_template, j_regressor)
    Ainv = jnp.linalg.inv(A)
    tinv_flat = jnp.transpose(Ainv, (0, 2, 3, 1)).reshape(B, 16, NUM_JOINTS)
    p_T = jnp.einsum('bik,bkn->bin', tinv_flat, skinning_weights).reshape(B, 4, 4, N)
    ph = jnp.concatenate([points, jnp.ones((B, 1, N), points.dtype)], axis=1)
    verts = jnp.sum(p_T * ph[:, None, :, :], axis=2)
    return verts[:, :3, :] - trans[:, :, None]


if __name__ == "__main__":
    B, N, V = 2, 512, 128
    key = jax.random.PRNGKey(0)
    k_pts, k_pose, k_w, k_trans, k_vt, k_jr = jax.random.split(key, 6)

    # Deterministic synthetic SMPL parameters (no .pkl checkpoint load).
    # TODO(synk): real SMPL template/regressor come from a pickle; synthesized here.
    v_template = jax.random.normal(k_vt, (1, V, 3), jnp.float32) * 0.5
    j_regressor = jax.nn.softmax(
        jax.random.normal(k_jr, (NUM_JOINTS, V), jnp.float32), axis=-1)

    points = jax.random.normal(k_pts, (B, 3, N), jnp.float32)
    pose = jax.random.normal(k_pose, (B, NUM_JOINTS * 3), jnp.float32) * 0.3
    skinning_weights = jax.nn.softmax(
        jax.random.normal(k_w, (B, NUM_JOINTS, N), jnp.float32) * 2.0, axis=1)
    trans = jax.random.normal(k_trans, (B, 3), jnp.float32)

    ref = _reference_forward(points, pose, skinning_weights,
                             v_template, j_regressor, trans)

    # 1) default fast path: bf16 weights + trans folded into the transforms.
    out = inv_skin_forward(points, pose, skinning_weights,
                           v_template, j_regressor, trans)
    result = jax.block_until_ready(out['cano_cloth_points'])
    np.testing.assert_allclose(np.asarray(result), np.asarray(ref),
                               rtol=2e-2, atol=2e-2)

    # 2) exact path: f32 weights, explicit in-kernel trans subtract.
    out_exact = inv_skin_forward(points, pose, skinning_weights,
                                 v_template, j_regressor, trans,
                                 weights_dtype=jnp.float32, fold_trans=False)
    np.testing.assert_allclose(np.asarray(out_exact['cano_cloth_points']),
                               np.asarray(ref), rtol=1e-4, atol=1e-4)

    # 3) ragged N (not a multiple of 128 / tile): exercises the pad + slice path.
    N2 = 333
    out_ragged = inv_skin_forward(points[:, :, :N2], pose,
                                  skinning_weights[:, :, :N2],
                                  v_template, j_regressor, trans,
                                  weights_dtype=jnp.float32, fold_trans=False)
    np.testing.assert_allclose(np.asarray(out_ragged['cano_cloth_points']),
                               np.asarray(ref[:, :, :N2]), rtol=1e-4, atol=1e-4)

    print("KERNEL_OK")
</pallas_src>

<mosaic_0001>
module attributes {stable_mosaic.version = 11 : i64} {
  func.func @_inv_skin_kernel_folded(%arg0: i32, %arg1: i32, %arg2: memref<1x12x24xf32, #tpu.memory_space<vmem>>, %arg3: memref<1x24x512xbf16, #tpu.memory_space<vmem>>, %arg4: memref<1x3x512xf32, #tpu.memory_space<vmem>>, %arg5: memref<1x3x512xf32, #tpu.memory_space<vmem>>) attributes {dimension_semantics = [#tpu.dimension_semantics<parallel>, #tpu.dimension_semantics<parallel>], iteration_bounds = array<i64: 2, 1>, scalar_prefetch = 0 : i64, scratch_operands = 0 : i64, tpu.core_type = #tpu.core_type<tc>, window_params = [{transform_indices = @transform_0, window_bounds = array<i64: 1, 12, 24>}, {transform_indices = @transform_1, window_bounds = array<i64: 1, 24, 512>}, {transform_indices = @transform_2, window_bounds = array<i64: 1, 3, 512>}, {transform_indices = @transform_3, window_bounds = array<i64: 1, 3, 512>}]} {
    %c0 = arith.constant 0 : index
    %c0_0 = arith.constant 0 : index
    %c0_1 = arith.constant 0 : index
    %0 = vector.load %arg2[%c0, %c0_0, %c0_1] : memref<1x12x24xf32, #tpu.memory_space<vmem>>, vector<1x12x24xf32>
    %1 = vector.shape_cast %0 : vector<1x12x24xf32> to vector<12x24xf32>
    %c0_2 = arith.constant 0 : index
    %c0_3 = arith.constant 0 : index
    %c0_4 = arith.constant 0 : index
    %2 = vector.load %arg3[%c0_2, %c0_3, %c0_4] : memref<1x24x512xbf16, #tpu.memory_space<vmem>>, vector<1x24x512xbf16>
    %3 = vector.shape_cast %2 : vector<1x24x512xbf16> to vector<24x512xbf16>
    %4 = arith.extf %3 : vector<24x512xbf16> to vector<24x512xf32>
    %c0_5 = arith.constant 0 : index
    %c0_6 = arith.constant 0 : index
    %c0_7 = arith.constant 0 : index
    %5 = vector.load %arg4[%c0_5, %c0_6, %c0_7] : memref<1x3x512xf32, #tpu.memory_space<vmem>>, vector<1x3x512xf32>
    %6 = vector.shape_cast %5 : vector<1x3x512xf32> to vector<3x512xf32>
    %cst = arith.constant dense<0.000000e+00> : vector<12x512xf32>
    %7 = tpu.matmul %1, %4, %cst {dimension_numbers = #tpu.dot_dimension_numbers<[1], [0], [0], [1], [0, 0, 1, 1], [], []>} : vector<12x24xf32>, vector<24x512xf32>, vector<12x512xf32> -> vector<12x512xf32>
    %8 = vector.extract_strided_slice %7 {offsets = [0, 0], sizes = [3, 512], strides = [1, 1]} : vector<12x512xf32> to vector<3x512xf32>
    %9 = vector.extract_strided_slice %6 {offsets = [0, 0], sizes = [1, 512], strides = [1, 1]} : vector<3x512xf32> to vector<1x512xf32>
    %10 = vector.broadcast %9 : vector<1x512xf32> to vector<3x512xf32>
    %11 = arith.mulf %8, %10 : vector<3x512xf32>
    %12 = vector.extract_strided_slice %7 {offsets = [3, 0], sizes = [3, 512], strides = [1, 1]} : vector<12x512xf32> to vector<3x512xf32>
    %13 = vector.extract_strided_slice %6 {offsets = [1, 0], sizes = [1, 512], strides = [1, 1]} : vector<3x512xf32> to vector<1x512xf32>
    %14 = vector.broadcast %13 : vector<1x512xf32> to vector<3x512xf32>
    %15 = arith.mulf %12, %14 : vector<3x512xf32>
    %16 = arith.addf %11, %15 : vector<3x512xf32>
    %17 = vector.extract_strided_slice %7 {offsets = [6, 0], sizes = [3, 512], strides = [1, 1]} : vector<12x512xf32> to vector<3x512xf32>
    %18 = vector.extract_strided_slice %6 {offsets = [2, 0], sizes = [1, 512], strides = [1, 1]} : vector<3x512xf32> to vector<1x512xf32>
    %19 = vector.broadcast %18 : vector<1x512xf32> to vector<3x512xf32>
    %20 = arith.mulf %17, %19 : vector<3x512xf32>
    %21 = arith.addf %16, %20 : vector<3x512xf32>
    %22 = vector.extract_strided_slice %7 {offsets = [9, 0], sizes = [3, 512], strides = [1, 1]} : vector<12x512xf32> to vector<3x512xf32>
    %23 = arith.addf %21, %22 : vector<3x512xf32>
    %c0_8 = arith.constant 0 : index
    %c0_9 = arith.constant 0 : index
    %c0_10 = arith.constant 0 : index
    %24 = vector.load %arg5[%c0_8, %c0_9, %c0_10] : memref<1x3x512xf32, #tpu.memory_space<vmem>>, vector<1x3x512xf32>
    %25 = vector.shape_cast %24 : vector<1x3x512xf32> to vector<3x512xf32>
    %26 = vector.shape_cast %23 : vector<3x512xf32> to vector<1x3x512xf32>
    tpu.vector_store %arg5[%c0_8, %c0_9, %c0_10], %26 {strides = array<i32>} : memref<1x3x512xf32, #tpu.memory_space<vmem>>, vector<1x3x512xf32>,
    return
  }
  func.func @transform_0(%arg0: i32, %arg1: i32) -> (i32, i32, i32) {
    %c0_i32 = arith.constant 0 : i32
    %c0_i32_0 = arith.constant 0 : i32
    %c0_i32_1 = arith.constant 0 : i32
    return %arg0, %c0_i32, %c0_i32_0 : i32, i32, i32
  }
  func.func @transform_1(%arg0: i32, %arg1: i32) -> (i32, i32, i32) {
    %c0_i32 = arith.constant 0 : i32
    %c0_i32_0 = arith.constant 0 : i32
    return %arg0, %c0_i32, %arg1 : i32, i32, i32
  }
  func.func @transform_2(%arg0: i32, %arg1: i32) -> (i32, i32, i32) {
    %c0_i32 = arith.constant 0 : i32
    %c0_i32_0 = arith.constant 0 : i32
    return %arg0, %c0_i32, %arg1 : i32, i32, i32
  }
  func.func @transform_3(%arg0: i32, %arg1: i32) -> (i32, i32, i32) {
    %c0_i32 = arith.constant 0 : i32
    %c0_i32_0 = arith.constant 0 : i32
    return %arg0, %c0_i32, %arg1 : i32, i32, i32
  }
}

</mosaic_0001>

<llo_original>
// kernel: tpu_custom_call.1
$region0: #{tpu_custom_call.1}
  #allocation0 [shape = 'u32[]', space=smem, size = 0x4, offset = 0x4, fixed_abs, tag = 'smem constant byte address 0x4 - core index']
  #allocation1 [shape = 'u32[144,128]{1,0:T(1,128)}', space=vmem, size = 0x12000, scoped, tag = 'internal scratch']
  %s0 = inlined_call_operand.vmem [shape: f32[2,12,24], index: 0, kind: input, shape index: {}]
  %s1 = inlined_call_operand.vmem [shape: bf16[2,24,512], index: 1, kind: input, shape index: {}]
  %s2 = inlined_call_operand.vmem [shape: f32[2,3,512], index: 2, kind: input, shape index: {}]
  %s3 = inlined_call_operand.vmem [shape: f32[2,3,512], index: 3, kind: output, shape index: {}]
  %s4 = sld [smem:[#allocation0]]
  $region45: #{tpu_custom_call.1} parent=0
    _
  %s6 = ssub.s32 1, %s4
  %s7 = scalar_select 0, %s6, %s4
  loop: start=0, step=1, limit=4
  $region2: #{tpu_custom_call.1} parent=0 // loop_pre_header
    _
  $region3: #{tpu_custom_call.1} parent=0 // loop_header
    %s9 = sphi 0, %s13
    %p10 = scmp.ge.s32.totalorder %s9, 4
    %s16 = sphi 0, %s28
    %s17 = sphi 0, %s24
    %s18 = sphi 0, %s16
    %s19 = sphi 0, %s17
    %s20 = sphi 0, %s18
    %s21 = sphi 0, %s19
    %s31 = sphi 0, %s33
    %s34 = sphi 0, %s31
    %s35 = sphi 0, %s34
    %s51 = sphi 0, %s35
    %s59 = sphi 0, %s61
    %s62 = sphi 0, %s59
    %s63 = sphi 0, %s62
    %s79 = sphi 0, %s63
    %s87 = sphi 0, %s89
    %s90 = sphi 0, %s87
    %s91 = sphi 0, %s90
    %s107 = sphi 0, %s91
    %s115 = sphi 0, %s117
    %s118 = sphi 0, %s115
    %s119 = sphi 0, %s118
    %s135 = sphi 0, %s119
  $region4: #{tpu_custom_call.1} parent=0 // loop_header_branch
    %12 = sbr.rel (%p10) target = $region8
  $region5: #{tpu_custom_call.1} parent=0 // loop_body
    %s14 = ssub.s32 %s9, 1
    %s15 = ssub.s32 %s9, 2
    %s22 = sadd.s32 1, %s17
    %p23 = scmp.ge.s32.totalorder %s22, 1
    %s24 = scalar_select %p23, 0, %s22
    %s25 = sadd.s32 1, %s16
    %s26 = scalar_select %p23, %s25, %s16
    %p27 = scmp.ge.s32.totalorder %s26, 2
    %s28 = scalar_select %p27, 0, %s26
    %s29 = ssub.s32 %s16, %s28
    %p30 = scmp.eq.s32.totalorder %s29, 0
    %s32 = sadd.s32 %s31, 1
    %s33 = scalar_select %p30, %s31, %s32
    %p36 = pneg %p30
    %p37 = scmp.eq.s32.totalorder %s9, 1
    %p38 = por %p36, %p37
    %p39 = scmp.ne.s32.totalorder %s31, %s34
    %p40 = scmp.eq.s32.totalorder %s9, 0
    %p41 = por %p39, %p40
    %p42 = scmp.ne.s32.totalorder %s31, %s34
    %p43 = scmp.eq.s32.totalorder %s14, 1
    %p44 = por %p42, %p43
    %p45 = scmp.ne.s32.totalorder %s34, %s35
    %p46 = scmp.eq.s32.totalorder %s14, 0
    %p47 = por %p45, %p46
    %p48 = scmp.ne.s32.totalorder %s34, %s35
    %p49 = scmp.eq.s32.totalorder %s15, 1
    %p50 = por %p48, %p49
    %p52 = scmp.ne.s32.totalorder %s35, %s51
    %p53 = scmp.eq.s32.totalorder %s15, 0
    %p54 = por %p52, %p53
    %s55 = ssub.s32 %s16, %s28
    %s56 = ssub.s32 %s17, %s24
    %s57 = sor.u32 %s55, %s56
    %p58 = scmp.eq.s32.totalorder %s57, 0
    %s60 = sadd.s32 %s59, 1
    %s61 = scalar_select %p58, %s59, %s60
    %p64 = pneg %p58
    %p65 = scmp.eq.s32.totalorder %s9, 1
    %p66 = por %p64, %p65
    %p67 = scmp.ne.s32.totalorder %s59, %s62
    %p68 = scmp.eq.s32.totalorder %s9, 0
    %p69 = por %p67, %p68
    %p70 = scmp.ne.s32.totalorder %s59, %s62
    %p71 = scmp.eq.s32.totalorder %s14, 1
    %p72 = por %p70, %p71
    %p73 = scmp.ne.s32.totalorder %s62, %s63
    %p74 = scmp.eq.s32.totalorder %s14, 0
    %p75 = por %p73, %p74
    %p76 = scmp.ne.s32.totalorder %s62, %s63
    %p77 = scmp.eq.s32.totalorder %s15, 1
    %p78 = por %p76, %p77
    %p80 = scmp.ne.s32.totalorder %s63, %s79
    %p81 = scmp.eq.s32.totalorder %s15, 0
    %p82 = por %p80, %p81
    %s83 = ssub.s32 %s16, %s28
    %s84 = ssub.s32 %s17, %s24
    %s85 = sor.u32 %s83, %s84
    %p86 = scmp.eq.s32.totalorder %s85, 0
    %s88 = sadd.s32 %s87, 1
    %s89 = scalar_select %p86, %s87, %s88
    %p92 = pneg %p86
    %p93 = scmp.eq.s32.totalorder %s9, 1
    %p94 = por %p92, %p93
    %p95 = scmp.ne.s32.totalorder %s87, %s90
    %p96 = scmp.eq.s32.totalorder %s9, 0
    %p97 = por %p95, %p96
    %p98 = scmp.ne.s32.totalorder %s87, %s90
    %p99 = scmp.eq.s32.totalorder %s14, 1
    %p100 = por %p98, %p99
    %p101 = scmp.ne.s32.totalorder %s90, %s91
    %p102 = scmp.eq.s32.totalorder %s14, 0
    %p103 = por %p101, %p102
    %p104 = scmp.ne.s32.totalorder %s90, %s91
    %p105 = scmp.eq.s32.totalorder %s15, 1
    %p106 = por %p104, %p105
    %p108 = scmp.ne.s32.totalorder %s91, %s107
    %p109 = scmp.eq.s32.totalorder %s15, 0
    %p110 = por %p108, %p109
    %s111 = ssub.s32 %s16, %s28
    %s112 = ssub.s32 %s17, %s24
    %s113 = sor.u32 %s111, %s112
    %p114 = scmp.eq.s32.totalorder %s113, 0
    %s116 = sadd.s32 %s115, 1
    %s117 = scalar_select %p114, %s115, %s116
    %p120 = pneg %p114
    %p121 = scmp.eq.s32.totalorder %s9, 1
    %p122 = por %p120, %p121
    %p123 = scmp.ne.s32.totalorder %s115, %s118
    %p124 = scmp.eq.s32.totalorder %s9, 0
    %p125 = por %p123, %p124
    %p126 = scmp.ne.s32.totalorder %s115, %s118
    %p127 = scmp.eq.s32.totalorder %s14, 1
    %p128 = por %p126, %p127
    %p129 = scmp.ne.s32.totalorder %s118, %s119
    %p130 = scmp.eq.s32.totalorder %s14, 0
    %p131 = por %p129, %p130
    %p132 = scmp.ne.s32.totalorder %s118, %s119
    %p133 = scmp.eq.s32.totalorder %s15, 1
    %p134 = por %p132, %p133
    %p136 = scmp.ne.s32.totalorder %s119, %s135
    %p137 = scmp.eq.s32.totalorder %s15, 0
    %p138 = por %p136, %p137
    %p139 = scmp.le.s32.totalorder 1, %s9
    %p140 = scmp.lt.s32.totalorder %s9, 3
    %p141 = pnand %p139, %p140
    %p142 = pneg %p141
    // Predicated region
    $region9: #{tpu_custom_call.1} parent=5 // pred_check
      _
    $region10: #{tpu_custom_call.1} parent=5 // pred_check_branch
      %144 = sbr.rel (%p141) target = $region12
    $region11: #{tpu_custom_call.1} parent=5 // pred_region
      %s145 = ssub.s32 %s9, 1
    $region12: #{tpu_custom_call.1} parent=5 // pred_fallthru
      _
    %p146 = scmp.lt.s32.totalorder %s9, 2
    // Predicated region
    $region13: #{tpu_custom_call.1} parent=5 // pred_check
      %p147 = pneg %p146
    $region14: #{tpu_custom_call.1} parent=5 // pred_check_branch
      %149 = sbr.rel (%p147) target = $region16
    $region15: #{tpu_custom_call.1} parent=5 // pred_region
      // Predicated region
      $region17: #{tpu_custom_call.1} parent=15 // pred_check
        %p150 = pneg %p41
      $region18: #{tpu_custom_call.1} parent=15 // pred_check_branch
        %152 = sbr.rel (%p150) target = $region20
      $region19: #{tpu_custom_call.1} parent=15 // pred_region
        %p153 = scmp.lt.s32.totalorder %s16, 1
        %s154 = scalar_select %p153, %s16, 1
        %s155 = smul.addr %s154, 2
        %s156 = smul.addr %s155, 8
        %s157 = scalar_lea.vmem %s0, %s156
      $region20: #{tpu_custom_call.1} parent=15 // pred_fallthru
        _
      // Predicated region
      $region21: #{tpu_custom_call.1} parent=15 // pred_check
        %p158 = pneg %p69
      $region22: #{tpu_custom_call.1} parent=15 // pred_check_branch
        %160 = sbr.rel (%p158) target = $region24
      $region23: #{tpu_custom_call.1} parent=15 // pred_region
        %s161 = smul.u32 4, %s17
        %p162 = scmp.lt.s32.totalorder %s16, 1
        %s163 = scalar_select %p162, %s16, 1
        %p164 = scmp.lt.s32.totalorder %s161, 3
        %s165 = scalar_select %p164, %s161, 3
        %s166 = smul.addr %s163, 12
        %s167 = sadd.s32 %s165, %s166
        %s168 = smul.addr %s167, 4
        %s169 = scalar_lea.vmem %s1, %s168
        %s170 = smul.u32 4, %s17
      $region24: #{tpu_custom_call.1} parent=15 // pred_fallthru
        _
      // Predicated region
      $region25: #{tpu_custom_call.1} parent=15 // pred_check
        %p171 = pneg %p97
      $region26: #{tpu_custom_call.1} parent=15 // pred_check_branch
        %173 = sbr.rel (%p171) target = $region28
      $region27: #{tpu_custom_call.1} parent=15 // pred_region
        %s174 = smul.u32 4, %s17
        %p175 = scmp.lt.s32.totalorder %s16, 1
        %s176 = scalar_select %p175, %s16, 1
        %p177 = scmp.lt.s32.totalorder %s174, 3
        %s178 = scalar_select %p177, %s174, 3
        %s179 = smul.addr %s176, 4
        %s180 = sadd.s32 %s178, %s179
        %s181 = smul.addr %s180, 4
        %s182 = scalar_lea.vmem %s2, %s181
        %s183 = smul.u32 4, %s17
      $region28: #{tpu_custom_call.1} parent=15 // pred_fallthru
        _
    $region16: #{tpu_custom_call.1} parent=5 // pred_fallthru
      _
    %p184 = scmp.le.s32.totalorder 1, %s9
    %p185 = scmp.lt.s32.totalorder %s9, 3
    %p186 = pnand %p184, %p185
    %p187 = pneg %p186
    // Predicated region
    $region29: #{tpu_custom_call.1} parent=5 // pred_check
      _
    $region30: #{tpu_custom_call.1} parent=5 // pred_check_branch
      %189 = sbr.rel (%p186) target = $region32
    $region31: #{tpu_custom_call.1} parent=5 // pred_region
      %s190 = ssub.s32 %s9, 1
      %p191 = scmp.lt.s32.totalorder %s18, 1
      %s192 = scalar_select %p191, %s18, 1
      %s193 = smul.addr %s192, 2
      %s194 = smul.addr %s193, 8
      %s195 = scalar_lea.vmem %s0, %s194
      %p196 = pneg %p47
      %p197 = pneg %p44
      %s198 = smul.u32 4, %s19
      %p199 = scmp.lt.s32.totalorder %s18, 1
      %s200 = scalar_select %p199, %s18, 1
      %p201 = scmp.lt.s32.totalorder %s198, 3
      %s202 = scalar_select %p201, %s198, 3
      %s203 = smul.addr %s200, 12
      %s204 = sadd.s32 %s202, %s203
      %s205 = smul.addr %s204, 4
      %s206 = scalar_lea.vmem %s1, %s205
      %p207 = pneg %p75
      %p208 = pneg %p72
      %s209 = smul.u32 4, %s19
      %p210 = scmp.lt.s32.totalorder %s18, 1
      %s211 = scalar_select %p210, %s18, 1
      %p212 = scmp.lt.s32.totalorder %s209, 3
      %s213 = scalar_select %p212, %s209, 3
      %s214 = smul.addr %s211, 4
      %s215 = sadd.s32 %s213, %s214
      %s216 = smul.addr %s215, 4
      %s217 = scalar_lea.vmem %s2, %s216
      %p218 = pneg %p103
      %p219 = pneg %p100
      %p220 = pneg %p131
      %p221 = pneg %p128
      %s222 = smul.u32 4, %s19
      %p223 = scmp.lt.s32.totalorder %s18, 1
      %s224 = scalar_select %p223, %s18, 1
      %p225 = scmp.lt.s32.totalorder %s222, 3
      %s226 = scalar_select %p225, %s222, 3
      %s227 = smul.addr %s224, 4
      %s228 = sadd.s32 %s226, %s227
      %s229 = smul.addr %s228, 4
      %s230 = scalar_lea.vmem %s3, %s229
      %p231 = scmp.lt.s32.totalorder %s18, 1
      %s232 = scalar_select %p231, %s18, 1
      %s233 = smul.addr %s232, 2
      %s234 = smul.addr %s233, 8
      %s235 = scalar_lea.vmem %s0, %s234
      %s236 = smul.u32 4, %s19
      %p237 = scmp.lt.s32.totalorder %s18, 1
      %s238 = scalar_select %p237, %s18, 1
      %p239 = scmp.lt.s32.totalorder %s236, 3
      %s240 = scalar_select %p239, %s236, 3
      %s241 = smul.addr %s238, 12
      %s242 = sadd.s32 %s240, %s241
      %s243 = smul.addr %s242, 4
      %s244 = scalar_lea.vmem %s1, %s243
      %s245 = smul.u32 4, %s19
      %s246 = smul.u32 4, %s19
      %p247 = scmp.lt.s32.totalorder %s18, 1
      %s248 = scalar_select %p247, %s18, 1
      %p249 = scmp.lt.s32.totalorder %s246, 3
      %s250 = scalar_select %p249, %s246, 3
      %s251 = smul.addr %s248, 4
      %s252 = sadd.s32 %s250, %s251
      %s253 = smul.addr %s252, 4
      %s254 = scalar_lea.vmem %s2, %s253
      %s255 = smul.u32 4, %s19
      %s256 = smul.u32 4, %s19
      %p257 = scmp.lt.s32.totalorder %s18, 1
      %s258 = scalar_select %p257, %s18, 1
      %p259 = scmp.lt.s32.totalorder %s256, 3
      %s260 = scalar_select %p259, %s256, 3
      %s261 = smul.addr %s258, 4
      %s262 = sadd.s32 %s260, %s261
      %s263 = smul.addr %s262, 4
      %s264 = scalar_lea.vmem %s3, %s263
      %s265 = smul.u32 4, %s19
      %v266 = vld [vmem:[%s235] sm:$0xff]
      %v267 = vld [vmem:[%s235 + $0x8] sm:$0xf]
      %v268 = vld [vmem:[%s244] sm:$0xff]
      %v269 = vld [vmem:[%s244 + $0x8] sm:$0xff]
      %v270 = vld [vmem:[%s244 + $0x10] sm:$0xff]
      %v271 = vld [vmem:[%s244 + $0x18] sm:$0xff]
      %v272 = vld [vmem:[%s244 + $0x20] sm:$0xff]
      %v273 = vld [vmem:[%s244 + $0x28] sm:$0xff]
      %v274 = vunpack.c.l.bf16 %v268
      %v275 = vunpack.c.h.bf16 %v268
      %v276 = vunpack.c.l.bf16 %v269
      %v277 = vunpack.c.h.bf16 %v269
      %v278 = vunpack.c.l.bf16 %v270
      %v279 = vunpack.c.h.bf16 %v270
      %v280 = vunpack.c.l.bf16 %v271
      %v281 = vunpack.c.h.bf16 %v271
      %v282 = vunpack.c.l.bf16 %v272
      %v283 = vunpack.c.h.bf16 %v272
      %v284 = vunpack.c.l.bf16 %v273
      %v285 = vunpack.c.h.bf16 %v273
      %v286 = vld [vmem:[%s254] sm:$0x77]
      %v287 = vld [vmem:[%s254 + $0x8] sm:$0x77]
      %vm288 = vcmask 195584
      %v290 = vsel %vm288, %v266, 0
      %v293 = vsel %vm288, %v267, 0
      %295 = vmatprep.subr.mxu0 %v275
      %296 = vmatpush1.msra.mxu0 %v274
      %297 = vmatprep.subr.mxu0 %v279
      %298 = vmatpush1.msra.mxu0 %v278
      %299 = vmatprep.subr.mxu0 %v283
      %300 = vmatpush1.msra.mxu0 %v282
      %301 = vmatprep.subr.mxu0 0.0
      %302 = vmatpush1.msra.mxu0 0.0
      %303 = vmatprep.subr.mxu0 0.0
      %304 = vmatpush1.msra.mxu0 0.0
      %305 = vmatprep.subr.mxu0 0.0
      %306 = vmatpush1.msra.mxu0 0.0
      %307 = vmatprep.subr.mxu0 0.0
      %308 = vmatpush1.msra.mxu0 0.0
      %309 = vmatprep.subr.mxu0 0.0
      %310 = vmatpush1.msra.mxu0 0.0
      %311 = vmatprep.subr.mxu0 0.0
      %312 = vmatpush1.msra.mxu0 0.0
      %313 = vmatprep.subr.mxu0 0.0
      %314 = vmatpush1.msra.mxu0 0.0
      %315 = vmatprep.subr.mxu0 0.0
      %316 = vmatpush1.msra.mxu0 0.0
      %317 = vmatprep.subr.mxu0 0.0
      %318 = vmatpush1.msra.mxu0 0.0
      %319 = vmatprep.subr.mxu0 0.0
      %320 = vmatpush1.msra.mxu0 0.0
      %321 = vmatprep.subr.mxu0 0.0
      %322 = vmatpush1.msra.mxu0 0.0
      %323 = vmatprep.subr.mxu0 0.0
      %324 = vmatpush1.msra.mxu0 0.0
      %325 = vmatprep.subr.mxu0 0.0
      %326 = vmatpush1.msra.mxu0 0.0
      %327 = vmatprep.subr.mxu0 0.0
      %328 = vmatpush1.msra.mxu0 0.0
      %329 = vmatprep.subr.mxu0 0.0
      %330 = vmatpush1.msra.mxu0 0.0
      %331 = vmatprep.subr.mxu0 0.0
      %332 = vmatpush1.msra.mxu0 0.0
      %333 = vmatprep.subr.mxu0 0.0
      %334 = vmatpush1.msra.mxu0 0.0
      %335 = vmatprep.subr.mxu0 0.0
      %336 = vmatpush1.msra.mxu0 0.0
      %337 = vmatprep.subr.mxu0 0.0
      %338 = vmatpush1.msra.mxu0 0.0
      %339 = vmatprep.subr.mxu0 0.0
      %340 = vmatpush1.msra.mxu0 0.0
      %341 = vmatprep.subr.mxu0 0.0
      %342 = vmatpush1.msra.mxu0 0.0
      %343 = vmatprep.subr.mxu0 0.0
      %344 = vmatpush1.msra.mxu0 0.0
      %345 = vmatprep.subr.mxu0 0.0
      %346 = vmatpush1.msra.mxu0 0.0
      %347 = vmatprep.subr.mxu0 0.0
      %348 = vmatpush1.msra.mxu0 0.0
      %349 = vmatprep.subr.mxu0 0.0
      %350 = vmatpush1.msra.mxu0 0.0
      %351 = vmatprep.subr.mxu0 0.0
      %352 = vmatpush1.msra.mxu0 0.0
      %353 = vmatprep.subr.mxu0 0.0
      %354 = vmatpush1.msra.mxu0 0.0
      %355 = vmatprep.subr.mxu0 0.0
      %356 = vmatpush1.msra.mxu0 0.0
      %357 = vmatprep.subr.mxu0 0.0
      %358 = vmatpush1.msra.mxu0 0.0
      %359 = vmatprep.mubr.f32.mxu0 0.0
      %360 = vmatmul.mubr.f32.gmra.mrb[0].mxu0 %v290
      %v361 = vpop.f32.mrb[0].mxu0
      %v362 = vadd.f32 0.0, %v361
      %v363 = vpop.f32.mrb[0].mxu0
      %v364 = vadd.f32 0.0, %v363
      %365 = vmatprep.mubr.f32.mxu0 0.0
      %366 = vmatmul.mubr.f32.gmra.mrb[0].mxu0 %v293
      %v367 = vpop.f32.mrb[0].mxu0
      %v368 = vadd.f32 0.0, %v367
      %v369 = vpop.f32.mrb[0].mxu0
      %v370 = vadd.f32 0.0, %v369
      %371 = vdwg.mxu0
      %372 = vmatprep.subr.mxu0 %v277
      %373 = vmatpush1.msra.mxu0 %v276
      %374 = vmatprep.subr.mxu0 %v281
      %375 = vmatpush1.msra.mxu0 %v280
      %376 = vmatprep.subr.mxu0 %v285
      %377 = vmatpush1.msra.mxu0 %v284
      %378 = vmatprep.subr.mxu0 0.0
      %379 = vmatpush1.msra.mxu0 0.0
      %380 = vmatprep.subr.mxu0 0.0
      %381 = vmatpush1.msra.mxu0 0.0
      %382 = vmatprep.subr.mxu0 0.0
      %383 = vmatpush1.msra.mxu0 0.0
      %384 = vmatprep.subr.mxu0 0.0
      %385 = vmatpush1.msra.mxu0 0.0
      %386 = vmatprep.subr.mxu0 0.0
      %387 = vmatpush1.msra.mxu0 0.0
      %388 = vmatprep.subr.mxu0 0.0
      %389 = vmatpush1.msra.mxu0 0.0
      %390 = vmatprep.subr.mxu0 0.0
      %391 = vmatpush1.msra.mxu0 0.0
      %392 = vmatprep.subr.mxu0 0.0
      %393 = vmatpush1.msra.mxu0 0.0
      %394 = vmatprep.subr.mxu0 0.0
      %395 = vmatpush1.msra.mxu0 0.0
      %396 = vmatprep.subr.mxu0 0.0
      %397 = vmatpush1.msra.mxu0 0.0
      %398 = vmatprep.subr.mxu0 0.0
      %399 = vmatpush1.msra.mxu0 0.0
      %400 = vmatprep.subr.mxu0 0.0
      %401 = vmatpush1.msra.mxu0 0.0
      %402 = vmatprep.subr.mxu0 0.0
      %403 = vmatpush1.msra.mxu0 0.0
      %404 = vmatprep.subr.mxu0 0.0
      %405 = vmatpush1.msra.mxu0 0.0
      %406 = vmatprep.subr.mxu0 0.0
      %407 = vmatpush1.msra.mxu0 0.0
      %408 = vmatprep.subr.mxu0 0.0
      %409 = vmatpush1.msra.mxu0 0.0
      %410 = vmatprep.subr.mxu0 0.0
      %411 = vmatpush1.msra.mxu0 0.0
      %412 = vmatprep.subr.mxu0 0.0
      %413 = vmatpush1.msra.mxu0 0.0
      %414 = vmatprep.subr.mxu0 0.0
      %415 = vmatpush1.msra.mxu0 0.0
      %416 = vmatprep.subr.mxu0 0.0
      %417 = vmatpush1.msra.mxu0 0.0
      %418 = vmatprep.subr.mxu0 0.0
      %419 = vmatpush1.msra.mxu0 0.0
      %420 = vmatprep.subr.mxu0 0.0
      %421 = vmatpush1.msra.mxu0 0.0
      %422 = vmatprep.subr.mxu0 0.0
      %423 = vmatpush1.msra.mxu0 0.0
      %424 = vmatprep.subr.mxu0 0.0
      %425 = vmatpush1.msra.mxu0 0.0
      %426 = vmatprep.subr.mxu0 0.0
      %427 = vmatpush1.msra.mxu0 0.0
      %428 = vmatprep.subr.mxu0 0.0
      %429 = vmatpush1.msra.mxu0 0.0
      %430 = vmatprep.subr.mxu0 0.0
      %431 = vmatpush1.msra.mxu0 0.0
      %432 = vmatprep.subr.mxu0 0.0
      %433 = vmatpush1.msra.mxu0 0.0
      %434 = vmatprep.subr.mxu0 0.0
      %435 = vmatpush1.msra.mxu0 0.0
      %436 = vmatprep.mubr.f32.mxu0 0.0
      %437 = vmatmul.mubr.f32.gmra.mrb[0].mxu0 %v290
      %v438 = vpop.f32.mrb[0].mxu0
      %v439 = vadd.f32 0.0, %v438
      %v440 = vpop.f32.mrb[0].mxu0
      %v441 = vadd.f32 0.0, %v440
      %442 = vmatprep.mubr.f32.mxu0 0.0
      %443 = vmatmul.mubr.f32.gmra.mrb[0].mxu0 %v293
      %v444 = vpop.f32.mrb[0].mxu0
      %v445 = vadd.f32 0.0, %v444
      %v446 = vpop.f32.mrb[0].mxu0
      %v447 = vadd.f32 0.0, %v446
      %448 = vdwg.mxu0
      %v451 = vlaneseq
      %v452 = vshrl.u32 %v451, 7
      %v453 = vsub.s32 0, %v452
      %v454 = vrot.slane %v286, %v453
      %v455 = vlaneseq
      %v456 = vshrl.u32 %v455, 7
      %v457 = vsub.s32 4, %v456
      %v458 = vrot.slane %v286, %v457
      %v459 = vlaneseq
      %v460 = vshrl.u32 %v459, 7
      %v461 = vsub.s32 0, %v460
      %v462 = vrot.slane %v287, %v461
      %v463 = vlaneseq
      %v464 = vshrl.u32 %v463, 7
      %v465 = vsub.s32 4, %v464
      %v466 = vrot.slane %v287, %v465
      %v471 = vlaneseq
      %v472 = vshrl.u32 %v471, 7
      %v473 = vsub.s32 0, %v472
      %v474 = vrot.slane %v454, %v473
      %v475 = vlaneseq
      %v476 = vshrl.u32 %v475, 7
      %v477 = vsub.s32 0, %v476
      %v478 = vrot.slane %v458, %v477
      %v479 = vlaneseq
      %v480 = vshrl.u32 %v479, 7
      %v481 = vsub.s32 0, %v480
      %v482 = vrot.slane %v462, %v481
      %v483 = vlaneseq
      %v484 = vshrl.u32 %v483, 7
      %v485 = vsub.s32 0, %v484
      %v486 = vrot.slane %v466, %v485
      %v487 = vmul.f32 %v362, %v474
      %v488 = vmul.f32 %v364, %v478
      %v489 = vmul.f32 %v439, %v482
      %v490 = vmul.f32 %v441, %v486
      %v491 = vlaneseq
      %v492 = vshrl.u32 %v491, 7
      %v493 = vsub.s32 1, %v492
      %v494 = vrot.slane %v286, %v493
      %v495 = vlaneseq
      %v496 = vshrl.u32 %v495, 7
      %v497 = vsub.s32 5, %v496
      %v498 = vrot.slane %v286, %v497
      %v499 = vlaneseq
      %v500 = vshrl.u32 %v499, 7
      %v501 = vsub.s32 1, %v500
      %v502 = vrot.slane %v287, %v501
      %v503 = vlaneseq
      %v504 = vshrl.u32 %v503, 7
      %v505 = vsub.s32 5, %v504
      %v506 = vrot.slane %v287, %v505
      %v511 = vlaneseq
      %v512 = vshrl.u32 %v511, 7
      %v513 = vsub.s32 1, %v512
      %v514 = vrot.slane %v494, %v513
      %v515 = vlaneseq
      %v516 = vshrl.u32 %v515, 7
      %v517 = vsub.s32 1, %v516
      %v518 = vrot.slane %v498, %v517
      %v519 = vlaneseq
      %v520 = vshrl.u32 %v519, 7
      %v521 = vsub.s32 1, %v520
      %v522 = vrot.slane %v502, %v521
      %v523 = vlaneseq
      %v524 = vshrl.u32 %v523, 7
      %v525 = vsub.s32 1, %v524
      %v526 = vrot.slane %v506, %v525
      %v527 = vmul.f32 %v362, %v514
      %v528 = vmul.f32 %v364, %v518
      %v529 = vmul.f32 %v439, %v522
      %v530 = vmul.f32 %v441, %v526
      %v535 = vrot.slane %v527, 3
      %v536 = vrot.slane %v528, 3
      %v537 = vrot.slane %v529, 3
      %v538 = vrot.slane %v530, 3
      %v543 = vadd.f32 %v487, %v535
      %v544 = vadd.f32 %v488, %v536
      %v545 = vadd.f32 %v489, %v537
      %v546 = vadd.f32 %v490, %v538
      %v547 = vlaneseq
      %v548 = vshrl.u32 %v547, 7
      %v549 = vsub.s32 2, %v548
      %v550 = vrot.slane %v286, %v549
      %v551 = vlaneseq
      %v552 = vshrl.u32 %v551, 7
      %v553 = vsub.s32 6, %v552
      %v554 = vrot.slane %v286, %v553
      %v555 = vlaneseq
      %v556 = vshrl.u32 %v555, 7
      %v557 = vsub.s32 2, %v556
      %v558 = vrot.slane %v287, %v557
      %v559 = vlaneseq
      %v560 = vshrl.u32 %v559, 7
      %v561 = vsub.s32 6, %v560
      %v562 = vrot.slane %v287, %v561
      %v567 = vlaneseq
      %v568 = vshrl.u32 %v567, 7
      %v569 = vsub.s32 2, %v568
      %v570 = vrot.slane %v550, %v569
      %v571 = vlaneseq
      %v572 = vshrl.u32 %v571, 7
      %v573 = vsub.s32 2, %v572
      %v574 = vrot.slane %v554, %v573
      %v575 = vlaneseq
      %v576 = vshrl.u32 %v575, 7
      %v577 = vsub.s32 2, %v576
      %v578 = vrot.slane %v558, %v577
      %v579 = vlaneseq
      %v580 = vshrl.u32 %v579, 7
      %v581 = vsub.s32 2, %v580
      %v582 = vrot.slane %v562, %v581
      %v583 = vmul.f32 %v362, %v570
      %v584 = vmul.f32 %v364, %v574
      %v585 = vmul.f32 %v439, %v578
      %v586 = vmul.f32 %v441, %v582
      %v587 = vmul.f32 %v368, %v570
      %v588 = vmul.f32 %v370, %v574
      %v589 = vmul.f32 %v445, %v578
      %v590 = vmul.f32 %v447, %v582
      %vm599 = vcmask 1041408
      %v600 = vrot.slane %v583, 6
      %v601 = vrot.slane %v587, 6
      %v602 = vsel %vm599, %v600, %v601
      %v603 = vrot.slane %v584, 6
      %v604 = vrot.slane %v588, 6
      %v605 = vsel %vm599, %v603, %v604
      %v606 = vrot.slane %v585, 6
      %v607 = vrot.slane %v589, 6
      %v608 = vsel %vm599, %v606, %v607
      %v609 = vrot.slane %v586, 6
      %v610 = vrot.slane %v590, 6
      %v611 = vsel %vm599, %v609, %v610
      %v616 = vadd.f32 %v543, %v602
      %v617 = vadd.f32 %v544, %v605
      %v618 = vadd.f32 %v545, %v608
      %v619 = vadd.f32 %v546, %v611
      %v624 = vrot.slane %v368, 1
      %v625 = vrot.slane %v370, 1
      %v626 = vrot.slane %v445, 1
      %v627 = vrot.slane %v447, 1
      %v632 = vadd.f32 %v616, %v624
      %v633 = vadd.f32 %v617, %v625
      %v634 = vadd.f32 %v618, %v626
      %v635 = vadd.f32 %v619, %v627
      %v640 = vcombine.low %v632, %v633
      %v641 = vcombine.low %v634, %v635
      %644 = vst [vmem:[%s264] sm:$0x77] %v640
      %645 = vst [vmem:[%s264 + $0x8] sm:$0x77] %v641
      %s646 = smul.u32 4, %s19
      %p647 = scmp.lt.s32.totalorder %s18, 1
      %s648 = scalar_select %p647, %s18, 1
      %p649 = scmp.lt.s32.totalorder %s646, 3
      %s650 = scalar_select %p649, %s646, 3
      %s651 = smul.addr %s648, 4
      %s652 = sadd.s32 %s650, %s651
      %s653 = smul.addr %s652, 4
      %s654 = scalar_lea.vmem %s3, %s653
      // Predicated region
      $region33: #{tpu_custom_call.1} parent=31 // pred_check
        %p655 = pneg %p128
      $region34: #{tpu_custom_call.1} parent=31 // pred_check_branch
        %657 = sbr.rel (%p655) target = $region36
      $region35: #{tpu_custom_call.1} parent=31 // pred_region
        %s658 = smul.u32 4, %s19
      $region36: #{tpu_custom_call.1} parent=31 // pred_fallthru
        _
    $region32: #{tpu_custom_call.1} parent=5 // pred_fallthru
      _
    %p659 = scmp.le.s32.totalorder 2, %s9
    // Predicated region
    $region37: #{tpu_custom_call.1} parent=5 // pred_check
      %p660 = pneg %p659
    $region38: #{tpu_custom_call.1} parent=5 // pred_check_branch
      %662 = sbr.rel (%p660) target = $region40
    $region39: #{tpu_custom_call.1} parent=5 // pred_region
      %s663 = ssub.s32 %s9, 2
      // Predicated region
      $region41: #{tpu_custom_call.1} parent=39 // pred_check
        %p664 = pneg %p134
      $region42: #{tpu_custom_call.1} parent=39 // pred_check_branch
        %666 = sbr.rel (%p664) target = $region44
      $region43: #{tpu_custom_call.1} parent=39 // pred_region
        %s667 = smul.u32 4, %s21
        %p668 = scmp.lt.s32.totalorder %s20, 1
        %s669 = scalar_select %p668, %s20, 1
        %p670 = scmp.lt.s32.totalorder %s667, 3
        %s671 = scalar_select %p670, %s667, 3
        %s672 = smul.addr %s669, 4
        %s673 = sadd.s32 %s671, %s672
        %s674 = smul.addr %s673, 4
        %s675 = scalar_lea.vmem %s3, %s674
      $region44: #{tpu_custom_call.1} parent=39 // pred_fallthru
        _
    $region40: #{tpu_custom_call.1} parent=5 // pred_fallthru
      _
  $region6: #{tpu_custom_call.1} parent=0 // loop_footer
    %s13 = sadd.s32 1, %s9
  $region7: #{tpu_custom_call.1} parent=0 // loop_footer_branch
    %8 = sbr.rel target = $region3
  $region8: #{tpu_custom_call.1} parent=0 // loop_exit
    _

</llo_original>
